<compile_context>
chip_gen: v6e
topology: v6e:2x2x1
jax: 0.10.0
libtpu: 0.0.40
codegen_flags: <defaults>
</compile_context>

<pallas_src>
import functools

import jax
import jax.numpy as jnp
from jax.experimental import pallas as pl
from jax.experimental.pallas import tpu as pltpu

LN_EPS = 1e-5
ROW_ALIGN = 16                      # sublane alignment (covers bf16 (16,128) packing)
FF_CHUNK = 512                      # max d_ff slice width live at once per block
DEFAULT_VMEM_CAP = 64 * 1024 * 1024  # conservative fallback (v7x per-TC VMEM)


def _round_up(x, m):
    return (x + m - 1) // m * m


@functools.lru_cache(maxsize=1)
def _vmem_capacity_bytes():
    """Physical VMEM of the current chip (trace-time query, safe fallback)."""
    try:
        return int(pltpu.get_tpu_info().vmem_capacity_bytes)
    except Exception:
        return DEFAULT_VMEM_CAP


def _choose_tm(n_rows, tm_max, want_two_steps):
    """Pick a row tile: fill the MXU M dim, minimize padding waste, and (on
    2-TensorCore chips) keep >= 2 grid steps so both cores get work."""
    n_aln = _round_up(max(n_rows, ROW_ALIGN), ROW_ALIGN)
    if n_aln <= tm_max:
        tm = n_aln
    else:
        cands = sorted({c for c in (128, 256, 384, 512, tm_max) if c <= tm_max})
        # score = padded rows + per-grid-step overhead (rows-equivalent)
        tm = min(cands, key=lambda c: _round_up(n_rows, c) + 32 * (_round_up(n_rows, c) // c))
    if want_two_steps and n_rows > 64 and _round_up(n_rows, tm) // tm == 1:
        tm = _round_up((n_aln + 1) // 2, ROW_ALIGN)
    return tm


def _layernorm(x, gamma, beta):
    # PyTorch nn.LayerNorm: biased variance over the last dim, eps=1e-5. f32 math.
    mu = jnp.mean(x, axis=-1, keepdims=True)
    var = jnp.mean((x - mu) * (x - mu), axis=-1, keepdims=True)
    return (x - mu) * jax.lax.rsqrt(var + LN_EPS) * gamma + beta


def _make_kernel(num_blocks, d_ff, ff_chunk):
    n_ff_chunks = (-(-d_ff // ff_chunk)) if d_ff > 0 else 0

    def kernel(*refs):
        x_ref = refs[0]
        out_ref = refs[-1]
        it = iter(refs[1:-1])

        in_g, in_b = next(it), next(it)          # input_norm gamma/beta  (1, d_input)   f32
        w_in, b_in = next(it), next(it)          # input linear           (d_input,d_model) bf16, (1,d_model) f32
        blocks = [tuple(next(it) for _ in range(6)) for _ in range(num_blocks)]
        # per block: ln_g (1,d_model) f32, ln_b (1,d_model) f32,
        #            w1 (d_model,d_ff) bf16, b1 (1,d_ff) f32,
        #            w2 (d_ff,d_model) bf16, b2 (1,d_model) f32
        fin_g, fin_b = next(it), next(it)        # final_norm gamma/beta  (1, d_model)   f32
        w_h, b_h = next(it), next(it)            # head linear (padded)   (d_model, d_head_pad) bf16, (1, d_head_pad) f32

        # LayerNorm / elementwise math in f32; only matmul operands go bf16
        # (MXU accumulates in f32 via preferred_element_type).
        x = x_ref[...].astype(jnp.float32)

        # input_norm + input linear
        x = _layernorm(x, in_g[...], in_b[...])
        x = jnp.dot(x.astype(jnp.bfloat16), w_in[...],
                    preferred_element_type=jnp.float32) + b_in[...]

        # pre-norm FF blocks (dropout == identity in eval mode).
        # TODO(synk): training-mode dropout not implemented (inference semantics).
        for (g, b, w1, b1, w2, b2) in blocks:
            residual = x
            h = _layernorm(x, g[...], b[...]).astype(jnp.bfloat16)
            # Chunk the hidden dim so the (tm, d_ff) f32 intermediate never
            # fully materializes; bias+ReLU fused per chunk, accumulate in f32.
            acc = jnp.zeros_like(residual)
            for c in range(n_ff_chunks):
                lo = c * ff_chunk
                hi = min(lo + ff_chunk, d_ff)
                hc = jnp.dot(h, w1[:, lo:hi],
                             preferred_element_type=jnp.float32) + b1[:, lo:hi]
                hc = jnp.maximum(hc, 0.0)  # ReLU
                acc = acc + jnp.dot(hc.astype(jnp.bfloat16), w2[lo:hi, :],
                                    preferred_element_type=jnp.float32)
            x = acc + b2[...] + residual

        # final_norm + head (head output columns padded to lane-dense width)
        x = _layernorm(x, fin_g[...], fin_b[...])
        x = jnp.dot(x.astype(jnp.bfloat16), w_h[...],
                    preferred_element_type=jnp.float32) + b_h[...]

        # bf16 slab halves the writeback of the padded columns.
        out_ref[...] = x.astype(out_ref.dtype)

    return kernel


def init_params(key, num_blocks, d_model, d_ff, d_input, d_head):
    """Deterministic parameter init mirroring the PyTorch module's __init__.

    Linear weights ~ N(0, 0.02), biases zero, LayerNorm gamma=1 / beta=0.
    Linear weights are stored pre-transposed as (in, out); 1-D vectors are
    stored as (1, D). Everything is kept f32 here (PyTorch parity); the
    wrapper casts matmul weights to bf16 for the kernel.
    """
    params = []
    keys = jax.random.split(key, 2 + 2 * num_blocks)

    # input_norm
    params.append(jnp.ones((1, d_input), jnp.float32))
    params.append(jnp.zeros((1, d_input), jnp.float32))
    # input linear (d_input -> d_model)
    params.append(0.02 * jax.random.normal(keys[0], (d_input, d_model), jnp.float32))
    params.append(jnp.zeros((1, d_model), jnp.float32))

    for i in range(num_blocks):
        k1, k2 = jax.random.split(keys[1 + i])
        params.append(jnp.ones((1, d_model), jnp.float32))   # layer_norm gamma
        params.append(jnp.zeros((1, d_model), jnp.float32))  # layer_norm beta
        params.append(0.02 * jax.random.normal(k1, (d_model, d_ff), jnp.float32))  # linear1 W^T
        params.append(jnp.zeros((1, d_ff), jnp.float32))                            # linear1 b
        params.append(0.02 * jax.random.normal(k2, (d_ff, d_model), jnp.float32))  # linear2 W^T
        params.append(jnp.zeros((1, d_model), jnp.float32))                         # linear2 b

    # final_norm
    params.append(jnp.ones((1, d_model), jnp.float32))
    params.append(jnp.zeros((1, d_model), jnp.float32))
    # head linear (d_model -> d_head)
    params.append(0.02 * jax.random.normal(keys[-1], (d_model, d_head), jnp.float32))
    params.append(jnp.zeros((1, d_head), jnp.float32))

    return params


def _prep_params(params, num_blocks, d_head_pad):
    """Cast matmul weights to bf16 and pad the head to a lane-dense width."""
    prepped = list(params)

    # input linear + per-block linear1/linear2 weights -> bf16
    weight_idx = [2]
    for i in range(num_blocks):
        base = 4 + 6 * i
        weight_idx += [base + 2, base + 4]
    for idx in weight_idx:
        prepped[idx] = prepped[idx].astype(jnp.bfloat16)

    # head weight/bias: zero-pad output columns to d_head_pad (>=128 lanes)
    w_h, b_h = prepped[-2], prepped[-1]
    pad = d_head_pad - w_h.shape[1]
    prepped[-2] = jnp.pad(w_h, ((0, 0), (0, pad))).astype(jnp.bfloat16)
    prepped[-1] = jnp.pad(b_h, ((0, 0), (0, pad)))
    return prepped


@functools.partial(jax.jit, static_argnames=("num_blocks", "d_head", "tm_max"))
def transformer_ff_stack(x, params, *, num_blocks, d_head, tm_max=None):
    """x: [batch, seq, d_input] -> [batch, seq, d_head] (float32)."""
    B, S, d_input = x.shape
    N = B * S

    d_model = params[2].shape[1]
    d_ff = params[6].shape[1] if num_blocks > 0 else 0
    ff_chunk = min(d_ff, FF_CHUNK) if d_ff > 0 else 1
    d_head_pad = _round_up(d_head, 128)          # lane-dense output slab

    # Chip-aware tile / VMEM sizing (trace-time).
    vmem_cap = _vmem_capacity_bytes()
    small_vmem = vmem_cap <= (96 << 20)          # v7x-class (64 MiB, 2 TCs)
    if tm_max is None:
        tm_max = 256 if small_vmem else 512
    tm = _choose_tm(N, tm_max, want_two_steps=small_vmem)
    n_pad = _round_up(N, tm)

    # Native-dtype input (kernel upcasts to f32 for LayerNorm math).
    x2 = x.reshape(N, d_input)
    if n_pad != N:
        # Zero rows are LayerNorm-safe (var=0 -> rsqrt(eps), output = beta).
        x2 = jnp.pad(x2, ((0, n_pad - N), (0, 0)))

    prepped = _prep_params(params, num_blocks, d_head_pad)
    weight_bytes = sum(int(p.size) * p.dtype.itemsize for p in prepped)

    out_dtype = jnp.bfloat16
    out_isz = jnp.dtype(out_dtype).itemsize
    x_isz = jnp.dtype(x2.dtype).itemsize

    # VMEM budget: resident weights + double-buffered x/out tiles + f32
    # activation scratch headroom, clamped to ~90% of this chip's VMEM.
    io_bytes = 2 * tm * d_input * x_isz + 2 * tm * d_head_pad * out_isz
    scratch_bytes = 2 * tm * (d_input + 3 * d_model + ff_chunk + d_head_pad) * 4
    budget = weight_bytes + io_bytes + scratch_bytes + (4 << 20)
    vmem_limit = int(min(max(budget, 32 << 20), int(vmem_cap * 0.9)))
    # TODO(synk): if resident bf16 weights ever approach the VMEM cap, stream
    #             per-block weights (grid axis over blocks / pl.Buffered(2))
    #             instead of keeping them all resident.

    grid = (n_pad // tm,)
    x_spec = pl.BlockSpec((tm, d_input), lambda i: (i, 0))
    # Parameters: whole-array, single resident copy in VMEM (constant across
    # the grid, so no double-buffered pipelining / no 2x weight footprint).
    param_specs = [pl.BlockSpec(memory_space=pltpu.MemorySpace.VMEM)
                   for _ in prepped]
    out_spec = pl.BlockSpec((tm, d_head_pad), lambda i: (i, 0))

    flops = 2 * n_pad * (d_input * d_model
                         + num_blocks * 2 * d_model * d_ff
                         + d_model * d_head_pad)
    bytes_accessed = (weight_bytes
                      + n_pad * d_input * x_isz
                      + n_pad * d_head_pad * out_isz)
    cost = pl.CostEstimate(flops=flops,
                           transcendentals=n_pad * (num_blocks + 2),
                           bytes_accessed=bytes_accessed)

    out = pl.pallas_call(
        _make_kernel(num_blocks, d_ff, ff_chunk),
        out_shape=jax.ShapeDtypeStruct((n_pad, d_head_pad), out_dtype),
        grid_spec=pltpu.PrefetchScalarGridSpec(
            num_scalar_prefetch=0,
            grid=grid,
            in_specs=[x_spec] + param_specs,
            out_specs=out_spec,
        ),
        compiler_params=pltpu.CompilerParams(
            dimension_semantics=("parallel",),
            vmem_limit_bytes=vmem_limit,
        ),
        cost_estimate=cost,
    )(x2, *prepped)

    # TODO(synk): for tiny d_head, pack rows into lanes inside the kernel
    #             ((tm, d_head) -> (tm/8, 8*d_head)) to remove the column
    #             padding writeback entirely.
    return out[:N, :d_head].astype(jnp.float32).reshape(B, S, d_head)


def reference_forward(x, params, num_blocks):
    """Plain-JAX f32 reference (same math as the PyTorch module, no Pallas)."""
    B, S, d_input = x.shape
    x = x.reshape(B * S, d_input).astype(jnp.float32)
    it = iter(params)
    in_g, in_b = next(it), next(it)
    w_in, b_in = next(it), next(it)
    x = _layernorm(x, in_g, in_b)
    x = x @ w_in + b_in
    for _ in range(num_blocks):
        g, b, w1, b1, w2, b2 = (next(it) for _ in range(6))
        res = x
        h = _layernorm(x, g, b)
        h = jnp.maximum(h @ w1 + b1, 0.0)
        h = h @ w2 + b2
        x = h + res
    fin_g, fin_b = next(it), next(it)
    w_h, b_h = next(it), next(it)
    x = _layernorm(x, fin_g, fin_b)
    x = x @ w_h + b_h
    return x.reshape(B, S, -1)


if __name__ == "__main__":
    # Small shapes consistent with the module's forward.
    num_blocks = 2
    d_input = 32
    d_model = 32
    d_ff = 64
    d_head = 16
    batch, seq = 2, 8

    key = jax.random.PRNGKey(0)
    kx, kp = jax.random.split(key)
    x = jax.random.normal(kx, (batch, seq, d_input), jnp.float32)
    params = init_params(kp, num_blocks, d_model, d_ff, d_input, d_head)

    out = transformer_ff_stack(x, params, num_blocks=num_blocks, d_head=d_head)
    out = jax.block_until_ready(out)

    ref = reference_forward(x, params, num_blocks)
    assert out.shape == (batch, seq, d_head), out.shape
    # bf16 matmul operands / bf16 output slab vs. f32 reference -> loosened tolerance.
    err = float(jnp.max(jnp.abs(out - ref)))
    assert err < 2e-2, err

    print("KERNEL_OK")
</pallas_src>

<mosaic_0001>
module attributes {stable_mosaic.version = 11 : i64} {
  func.func @kernel(%arg0: i32, %arg1: memref<16x32xf32, #tpu.memory_space<vmem>>, %arg2: memref<1x32xf32, #tpu.memory_space<vmem>>, %arg3: memref<1x32xf32, #tpu.memory_space<vmem>>, %arg4: memref<32x32xbf16, #tpu.memory_space<vmem>>, %arg5: memref<1x32xf32, #tpu.memory_space<vmem>>, %arg6: memref<1x32xf32, #tpu.memory_space<vmem>>, %arg7: memref<1x32xf32, #tpu.memory_space<vmem>>, %arg8: memref<32x64xbf16, #tpu.memory_space<vmem>>, %arg9: memref<1x64xf32, #tpu.memory_space<vmem>>, %arg10: memref<64x32xbf16, #tpu.memory_space<vmem>>, %arg11: memref<1x32xf32, #tpu.memory_space<vmem>>, %arg12: memref<1x32xf32, #tpu.memory_space<vmem>>, %arg13: memref<1x32xf32, #tpu.memory_space<vmem>>, %arg14: memref<32x64xbf16, #tpu.memory_space<vmem>>, %arg15: memref<1x64xf32, #tpu.memory_space<vmem>>, %arg16: memref<64x32xbf16, #tpu.memory_space<vmem>>, %arg17: memref<1x32xf32, #tpu.memory_space<vmem>>, %arg18: memref<1x32xf32, #tpu.memory_space<vmem>>, %arg19: memref<1x32xf32, #tpu.memory_space<vmem>>, %arg20: memref<32x128xbf16, #tpu.memory_space<vmem>>, %arg21: memref<1x128xf32, #tpu.memory_space<vmem>>, %arg22: memref<16x128xbf16, #tpu.memory_space<vmem>>) attributes {dimension_semantics = [#tpu.dimension_semantics<parallel>], iteration_bounds = array<i64: 1>, scalar_prefetch = 0 : i64, scratch_operands = 0 : i64, tpu.core_type = #tpu.core_type<tc>, window_params = [{transform_indices = @transform_0, window_bounds = array<i64: 16, 32>}, {pipeline_mode = #tpu.pipeline_mode<synchronous>, transform_indices = @transform_1, window_bounds = array<i64: 1, 32>}, {pipeline_mode = #tpu.pipeline_mode<synchronous>, transform_indices = @transform_2, window_bounds = array<i64: 1, 32>}, {pipeline_mode = #tpu.pipeline_mode<synchronous>, transform_indices = @transform_3, window_bounds = array<i64: 32, 32>}, {pipeline_mode = #tpu.pipeline_mode<synchronous>, transform_indices = @transform_4, window_bounds = array<i64: 1, 32>}, {pipeline_mode = #tpu.pipeline_mode<synchronous>, transform_indices = @transform_5, window_bounds = array<i64: 1, 32>}, {pipeline_mode = #tpu.pipeline_mode<synchronous>, transform_indices = @transform_6, window_bounds = array<i64: 1, 32>}, {pipeline_mode = #tpu.pipeline_mode<synchronous>, transform_indices = @transform_7, window_bounds = array<i64: 32, 64>}, {pipeline_mode = #tpu.pipeline_mode<synchronous>, transform_indices = @transform_8, window_bounds = array<i64: 1, 64>}, {pipeline_mode = #tpu.pipeline_mode<synchronous>, transform_indices = @transform_9, window_bounds = array<i64: 64, 32>}, {pipeline_mode = #tpu.pipeline_mode<synchronous>, transform_indices = @transform_10, window_bounds = array<i64: 1, 32>}, {pipeline_mode = #tpu.pipeline_mode<synchronous>, transform_indices = @transform_11, window_bounds = array<i64: 1, 32>}, {pipeline_mode = #tpu.pipeline_mode<synchronous>, transform_indices = @transform_12, window_bounds = array<i64: 1, 32>}, {pipeline_mode = #tpu.pipeline_mode<synchronous>, transform_indices = @transform_13, window_bounds = array<i64: 32, 64>}, {pipeline_mode = #tpu.pipeline_mode<synchronous>, transform_indices = @transform_14, window_bounds = array<i64: 1, 64>}, {pipeline_mode = #tpu.pipeline_mode<synchronous>, transform_indices = @transform_15, window_bounds = array<i64: 64, 32>}, {pipeline_mode = #tpu.pipeline_mode<synchronous>, transform_indices = @transform_16, window_bounds = array<i64: 1, 32>}, {pipeline_mode = #tpu.pipeline_mode<synchronous>, transform_indices = @transform_17, window_bounds = array<i64: 1, 32>}, {pipeline_mode = #tpu.pipeline_mode<synchronous>, transform_indices = @transform_18, window_bounds = array<i64: 1, 32>}, {pipeline_mode = #tpu.pipeline_mode<synchronous>, transform_indices = @transform_19, window_bounds = array<i64: 32, 128>}, {pipeline_mode = #tpu.pipeline_mode<synchronous>, transform_indices = @transform_20, window_bounds = array<i64: 1, 128>}, {transform_indices = @transform_21, window_bounds = array<i64: 16, 128>}]} {
    %c0 = arith.constant 0 : index
    %c0_0 = arith.constant 0 : index
    %0 = vector.load %arg1[%c0, %c0_0] : memref<16x32xf32, #tpu.memory_space<vmem>>, vector<16x32xf32>
    %c0_1 = arith.constant 0 : index
    %c0_2 = arith.constant 0 : index
    %1 = vector.load %arg2[%c0_1, %c0_2] : memref<1x32xf32, #tpu.memory_space<vmem>>, vector<1x32xf32>
    %c0_3 = arith.constant 0 : index
    %c0_4 = arith.constant 0 : index
    %2 = vector.load %arg3[%c0_3, %c0_4] : memref<1x32xf32, #tpu.memory_space<vmem>>, vector<1x32xf32>
    %cst = arith.constant dense<0.000000e+00> : vector<16xf32>
    %3 = vector.multi_reduction <add>, %0, %cst [1] : vector<16x32xf32> to vector<16xf32>
    %4 = vector.shape_cast %3 : vector<16xf32> to vector<16x1xf32>
    %cst_5 = arith.constant 3.200000e+01 : f32
    %5 = vector.broadcast %cst_5 : f32 to vector<16x1xf32>
    %6 = arith.divf %4, %5 : vector<16x1xf32>
    %7 = vector.broadcast %6 : vector<16x1xf32> to vector<16x32xf32>
    %8 = arith.subf %0, %7 : vector<16x32xf32>
    %9 = vector.broadcast %6 : vector<16x1xf32> to vector<16x32xf32>
    %10 = arith.subf %0, %9 : vector<16x32xf32>
    %11 = arith.mulf %8, %10 : vector<16x32xf32>
    %cst_6 = arith.constant dense<0.000000e+00> : vector<16xf32>
    %12 = vector.multi_reduction <add>, %11, %cst_6 [1] : vector<16x32xf32> to vector<16xf32>
    %13 = vector.shape_cast %12 : vector<16xf32> to vector<16x1xf32>
    %cst_7 = arith.constant 3.200000e+01 : f32
    %14 = vector.broadcast %cst_7 : f32 to vector<16x1xf32>
    %15 = arith.divf %13, %14 : vector<16x1xf32>
    %16 = vector.broadcast %6 : vector<16x1xf32> to vector<16x32xf32>
    %17 = arith.subf %0, %16 : vector<16x32xf32>
    %cst_8 = arith.constant 9.99999974E-6 : f32
    %18 = vector.broadcast %cst_8 : f32 to vector<16x1xf32>
    %19 = arith.addf %15, %18 : vector<16x1xf32>
    %20 = math.rsqrt %19 : vector<16x1xf32>
    %21 = vector.broadcast %20 : vector<16x1xf32> to vector<16x32xf32>
    %22 = arith.mulf %17, %21 : vector<16x32xf32>
    %23 = vector.broadcast %1 : vector<1x32xf32> to vector<16x32xf32>
    %24 = arith.mulf %22, %23 : vector<16x32xf32>
    %25 = vector.broadcast %2 : vector<1x32xf32> to vector<16x32xf32>
    %26 = arith.addf %24, %25 : vector<16x32xf32>
    %27 = arith.truncf %26 : vector<16x32xf32> to vector<16x32xbf16>
    %c0_9 = arith.constant 0 : index
    %c0_10 = arith.constant 0 : index
    %28 = vector.load %arg4[%c0_9, %c0_10] : memref<32x32xbf16, #tpu.memory_space<vmem>>, vector<32x32xbf16>
    %cst_11 = arith.constant dense<0.000000e+00> : vector<16x32xf32>
    %29 = tpu.matmul %27, %28, %cst_11 {dimension_numbers = #tpu.dot_dimension_numbers<[1], [0], [0], [1], [0, 0, 1, 1], [], []>} : vector<16x32xbf16>, vector<32x32xbf16>, vector<16x32xf32> -> vector<16x32xf32>
    %c0_12 = arith.constant 0 : index
    %c0_13 = arith.constant 0 : index
    %30 = vector.load %arg5[%c0_12, %c0_13] : memref<1x32xf32, #tpu.memory_space<vmem>>, vector<1x32xf32>
    %31 = vector.broadcast %30 : vector<1x32xf32> to vector<16x32xf32>
    %32 = arith.addf %29, %31 : vector<16x32xf32>
    %c0_14 = arith.constant 0 : index
    %c0_15 = arith.constant 0 : index
    %33 = vector.load %arg6[%c0_14, %c0_15] : memref<1x32xf32, #tpu.memory_space<vmem>>, vector<1x32xf32>
    %c0_16 = arith.constant 0 : index
    %c0_17 = arith.constant 0 : index
    %34 = vector.load %arg7[%c0_16, %c0_17] : memref<1x32xf32, #tpu.memory_space<vmem>>, vector<1x32xf32>
    %cst_18 = arith.constant dense<0.000000e+00> : vector<16xf32>
    %35 = vector.multi_reduction <add>, %32, %cst_18 [1] : vector<16x32xf32> to vector<16xf32>
    %36 = vector.shape_cast %35 : vector<16xf32> to vector<16x1xf32>
    %cst_19 = arith.constant 3.200000e+01 : f32
    %37 = vector.broadcast %cst_19 : f32 to vector<16x1xf32>
    %38 = arith.divf %36, %37 : vector<16x1xf32>
    %39 = vector.broadcast %38 : vector<16x1xf32> to vector<16x32xf32>
    %40 = arith.subf %32, %39 : vector<16x32xf32>
    %41 = vector.broadcast %38 : vector<16x1xf32> to vector<16x32xf32>
    %42 = arith.subf %32, %41 : vector<16x32xf32>
    %43 = arith.mulf %40, %42 : vector<16x32xf32>
    %cst_20 = arith.constant dense<0.000000e+00> : vector<16xf32>
    %44 = vector.multi_reduction <add>, %43, %cst_20 [1] : vector<16x32xf32> to vector<16xf32>
    %45 = vector.shape_cast %44 : vector<16xf32> to vector<16x1xf32>
    %cst_21 = arith.constant 3.200000e+01 : f32
    %46 = vector.broadcast %cst_21 : f32 to vector<16x1xf32>
    %47 = arith.divf %45, %46 : vector<16x1xf32>
    %48 = vector.broadcast %38 : vector<16x1xf32> to vector<16x32xf32>
    %49 = arith.subf %32, %48 : vector<16x32xf32>
    %cst_22 = arith.constant 9.99999974E-6 : f32
    %50 = vector.broadcast %cst_22 : f32 to vector<16x1xf32>
    %51 = arith.addf %47, %50 : vector<16x1xf32>
    %52 = math.rsqrt %51 : vector<16x1xf32>
    %53 = vector.broadcast %52 : vector<16x1xf32> to vector<16x32xf32>
    %54 = arith.mulf %49, %53 : vector<16x32xf32>
    %55 = vector.broadcast %33 : vector<1x32xf32> to vector<16x32xf32>
    %56 = arith.mulf %54, %55 : vector<16x32xf32>
    %57 = vector.broadcast %34 : vector<1x32xf32> to vector<16x32xf32>
    %58 = arith.addf %56, %57 : vector<16x32xf32>
    %59 = arith.truncf %58 : vector<16x32xf32> to vector<16x32xbf16>
    %cst_23 = arith.constant 0.000000e+00 : f32
    %60 = vector.broadcast %cst_23 : f32 to vector<16x32xf32>
    %c0_24 = arith.constant 0 : index
    %c0_25 = arith.constant 0 : index
    %61 = vector.load %arg8[%c0_24, %c0_25] : memref<32x64xbf16, #tpu.memory_space<vmem>>, vector<32x64xbf16>
    %cst_26 = arith.constant dense<0.000000e+00> : vector<16x64xf32>
    %62 = tpu.matmul %59, %61, %cst_26 {dimension_numbers = #tpu.dot_dimension_numbers<[1], [0], [0], [1], [0, 0, 1, 1], [], []>} : vector<16x32xbf16>, vector<32x64xbf16>, vector<16x64xf32> -> vector<16x64xf32>
    %c0_27 = arith.constant 0 : index
    %c0_28 = arith.constant 0 : index
    %63 = vector.load %arg9[%c0_27, %c0_28] : memref<1x64xf32, #tpu.memory_space<vmem>>, vector<1x64xf32>
    %64 = vector.broadcast %63 : vector<1x64xf32> to vector<16x64xf32>
    %65 = arith.addf %62, %64 : vector<16x64xf32>
    %cst_29 = arith.constant 0.000000e+00 : f32
    %66 = vector.broadcast %cst_29 : f32 to vector<16x64xf32>
    %67 = arith.maximumf %65, %66 : vector<16x64xf32>
    %68 = arith.truncf %67 : vector<16x64xf32> to vector<16x64xbf16>
    %c0_30 = arith.constant 0 : index
    %c0_31 = arith.constant 0 : index
    %69 = vector.load %arg10[%c0_30, %c0_31] : memref<64x32xbf16, #tpu.memory_space<vmem>>, vector<64x32xbf16>
    %cst_32 = arith.constant dense<0.000000e+00> : vector<16x32xf32>
    %70 = tpu.matmul %68, %69, %cst_32 {dimension_numbers = #tpu.dot_dimension_numbers<[1], [0], [0], [1], [0, 0, 1, 1], [], []>} : vector<16x64xbf16>, vector<64x32xbf16>, vector<16x32xf32> -> vector<16x32xf32>
    %71 = arith.addf %60, %70 : vector<16x32xf32>
    %c0_33 = arith.constant 0 : index
    %c0_34 = arith.constant 0 : index
    %72 = vector.load %arg11[%c0_33, %c0_34] : memref<1x32xf32, #tpu.memory_space<vmem>>, vector<1x32xf32>
    %73 = vector.broadcast %72 : vector<1x32xf32> to vector<16x32xf32>
    %74 = arith.addf %71, %73 : vector<16x32xf32>
    %75 = arith.addf %74, %32 : vector<16x32xf32>
    %c0_35 = arith.constant 0 : index
    %c0_36 = arith.constant 0 : index
    %76 = vector.load %arg12[%c0_35, %c0_36] : memref<1x32xf32, #tpu.memory_space<vmem>>, vector<1x32xf32>
    %c0_37 = arith.constant 0 : index
    %c0_38 = arith.constant 0 : index
    %77 = vector.load %arg13[%c0_37, %c0_38] : memref<1x32xf32, #tpu.memory_space<vmem>>, vector<1x32xf32>
    %cst_39 = arith.constant dense<0.000000e+00> : vector<16xf32>
    %78 = vector.multi_reduction <add>, %75, %cst_39 [1] : vector<16x32xf32> to vector<16xf32>
    %79 = vector.shape_cast %78 : vector<16xf32> to vector<16x1xf32>
    %cst_40 = arith.constant 3.200000e+01 : f32
    %80 = vector.broadcast %cst_40 : f32 to vector<16x1xf32>
    %81 = arith.divf %79, %80 : vector<16x1xf32>
    %82 = vector.broadcast %81 : vector<16x1xf32> to vector<16x32xf32>
    %83 = arith.subf %75, %82 : vector<16x32xf32>
    %84 = vector.broadcast %81 : vector<16x1xf32> to vector<16x32xf32>
    %85 = arith.subf %75, %84 : vector<16x32xf32>
    %86 = arith.mulf %83, %85 : vector<16x32xf32>
    %cst_41 = arith.constant dense<0.000000e+00> : vector<16xf32>
    %87 = vector.multi_reduction <add>, %86, %cst_41 [1] : vector<16x32xf32> to vector<16xf32>
    %88 = vector.shape_cast %87 : vector<16xf32> to vector<16x1xf32>
    %cst_42 = arith.constant 3.200000e+01 : f32
    %89 = vector.broadcast %cst_42 : f32 to vector<16x1xf32>
    %90 = arith.divf %88, %89 : vector<16x1xf32>
    %91 = vector.broadcast %81 : vector<16x1xf32> to vector<16x32xf32>
    %92 = arith.subf %75, %91 : vector<16x32xf32>
    %cst_43 = arith.constant 9.99999974E-6 : f32
    %93 = vector.broadcast %cst_43 : f32 to vector<16x1xf32>
    %94 = arith.addf %90, %93 : vector<16x1xf32>
    %95 = math.rsqrt %94 : vector<16x1xf32>
    %96 = vector.broadcast %95 : vector<16x1xf32> to vector<16x32xf32>
    %97 = arith.mulf %92, %96 : vector<16x32xf32>
    %98 = vector.broadcast %76 : vector<1x32xf32> to vector<16x32xf32>
    %99 = arith.mulf %97, %98 : vector<16x32xf32>
    %100 = vector.broadcast %77 : vector<1x32xf32> to vector<16x32xf32>
    %101 = arith.addf %99, %100 : vector<16x32xf32>
    %102 = arith.truncf %101 : vector<16x32xf32> to vector<16x32xbf16>
    %cst_44 = arith.constant 0.000000e+00 : f32
    %103 = vector.broadcast %cst_44 : f32 to vector<16x32xf32>
    %c0_45 = arith.constant 0 : index
    %c0_46 = arith.constant 0 : index
    %104 = vector.load %arg14[%c0_45, %c0_46] : memref<32x64xbf16, #tpu.memory_space<vmem>>, vector<32x64xbf16>
    %cst_47 = arith.constant dense<0.000000e+00> : vector<16x64xf32>
    %105 = tpu.matmul %102, %104, %cst_47 {dimension_numbers = #tpu.dot_dimension_numbers<[1], [0], [0], [1], [0, 0, 1, 1], [], []>} : vector<16x32xbf16>, vector<32x64xbf16>, vector<16x64xf32> -> vector<16x64xf32>
    %c0_48 = arith.constant 0 : index
    %c0_49 = arith.constant 0 : index
    %106 = vector.load %arg15[%c0_48, %c0_49] : memref<1x64xf32, #tpu.memory_space<vmem>>, vector<1x64xf32>
    %107 = vector.broadcast %106 : vector<1x64xf32> to vector<16x64xf32>
    %108 = arith.addf %105, %107 : vector<16x64xf32>
    %cst_50 = arith.constant 0.000000e+00 : f32
    %109 = vector.broadcast %cst_50 : f32 to vector<16x64xf32>
    %110 = arith.maximumf %108, %109 : vector<16x64xf32>
    %111 = arith.truncf %110 : vector<16x64xf32> to vector<16x64xbf16>
    %c0_51 = arith.constant 0 : index
    %c0_52 = arith.constant 0 : index
    %112 = vector.load %arg16[%c0_51, %c0_52] : memref<64x32xbf16, #tpu.memory_space<vmem>>, vector<64x32xbf16>
    %cst_53 = arith.constant dense<0.000000e+00> : vector<16x32xf32>
    %113 = tpu.matmul %111, %112, %cst_53 {dimension_numbers = #tpu.dot_dimension_numbers<[1], [0], [0], [1], [0, 0, 1, 1], [], []>} : vector<16x64xbf16>, vector<64x32xbf16>, vector<16x32xf32> -> vector<16x32xf32>
    %114 = arith.addf %103, %113 : vector<16x32xf32>
    %c0_54 = arith.constant 0 : index
    %c0_55 = arith.constant 0 : index
    %115 = vector.load %arg17[%c0_54, %c0_55] : memref<1x32xf32, #tpu.memory_space<vmem>>, vector<1x32xf32>
    %116 = vector.broadcast %115 : vector<1x32xf32> to vector<16x32xf32>
    %117 = arith.addf %114, %116 : vector<16x32xf32>
    %118 = arith.addf %117, %75 : vector<16x32xf32>
    %c0_56 = arith.constant 0 : index
    %c0_57 = arith.constant 0 : index
    %119 = vector.load %arg18[%c0_56, %c0_57] : memref<1x32xf32, #tpu.memory_space<vmem>>, vector<1x32xf32>
    %c0_58 = arith.constant 0 : index
    %c0_59 = arith.constant 0 : index
    %120 = vector.load %arg19[%c0_58, %c0_59] : memref<1x32xf32, #tpu.memory_space<vmem>>, vector<1x32xf32>
    %cst_60 = arith.constant dense<0.000000e+00> : vector<16xf32>
    %121 = vector.multi_reduction <add>, %118, %cst_60 [1] : vector<16x32xf32> to vector<16xf32>
    %122 = vector.shape_cast %121 : vector<16xf32> to vector<16x1xf32>
    %cst_61 = arith.constant 3.200000e+01 : f32
    %123 = vector.broadcast %cst_61 : f32 to vector<16x1xf32>
    %124 = arith.divf %122, %123 : vector<16x1xf32>
    %125 = vector.broadcast %124 : vector<16x1xf32> to vector<16x32xf32>
    %126 = arith.subf %118, %125 : vector<16x32xf32>
    %127 = vector.broadcast %124 : vector<16x1xf32> to vector<16x32xf32>
    %128 = arith.subf %118, %127 : vector<16x32xf32>
    %129 = arith.mulf %126, %128 : vector<16x32xf32>
    %cst_62 = arith.constant dense<0.000000e+00> : vector<16xf32>
    %130 = vector.multi_reduction <add>, %129, %cst_62 [1] : vector<16x32xf32> to vector<16xf32>
    %131 = vector.shape_cast %130 : vector<16xf32> to vector<16x1xf32>
    %cst_63 = arith.constant 3.200000e+01 : f32
    %132 = vector.broadcast %cst_63 : f32 to vector<16x1xf32>
    %133 = arith.divf %131, %132 : vector<16x1xf32>
    %134 = vector.broadcast %124 : vector<16x1xf32> to vector<16x32xf32>
    %135 = arith.subf %118, %134 : vector<16x32xf32>
    %cst_64 = arith.constant 9.99999974E-6 : f32
    %136 = vector.broadcast %cst_64 : f32 to vector<16x1xf32>
    %137 = arith.addf %133, %136 : vector<16x1xf32>
    %138 = math.rsqrt %137 : vector<16x1xf32>
    %139 = vector.broadcast %138 : vector<16x1xf32> to vector<16x32xf32>
    %140 = arith.mulf %135, %139 : vector<16x32xf32>
    %141 = vector.broadcast %119 : vector<1x32xf32> to vector<16x32xf32>
    %142 = arith.mulf %140, %141 : vector<16x32xf32>
    %143 = vector.broadcast %120 : vector<1x32xf32> to vector<16x32xf32>
    %144 = arith.addf %142, %143 : vector<16x32xf32>
    %145 = arith.truncf %144 : vector<16x32xf32> to vector<16x32xbf16>
    %c0_65 = arith.constant 0 : index
    %c0_66 = arith.constant 0 : index
    %146 = vector.load %arg20[%c0_65, %c0_66] : memref<32x128xbf16, #tpu.memory_space<vmem>>, vector<32x128xbf16>
    %cst_67 = arith.constant dense<0.000000e+00> : vector<16x128xf32>
    %147 = tpu.matmul %145, %146, %cst_67 {dimension_numbers = #tpu.dot_dimension_numbers<[1], [0], [0], [1], [0, 0, 1, 1], [], []>} : vector<16x32xbf16>, vector<32x128xbf16>, vector<16x128xf32> -> vector<16x128xf32>
    %c0_68 = arith.constant 0 : index
    %c0_69 = arith.constant 0 : index
    %148 = vector.load %arg21[%c0_68, %c0_69] : memref<1x128xf32, #tpu.memory_space<vmem>>, vector<1x128xf32>
    %149 = vector.broadcast %148 : vector<1x128xf32> to vector<16x128xf32>
    %150 = arith.addf %147, %149 : vector<16x128xf32>
    %151 = arith.truncf %150 : vector<16x128xf32> to vector<16x128xbf16>
    %c0_70 = arith.constant 0 : index
    %c0_71 = arith.constant 0 : index
    %152 = vector.load %arg22[%c0_70, %c0_71] : memref<16x128xbf16, #tpu.memory_space<vmem>>, vector<16x128xbf16>
    tpu.vector_store %arg22[%c0_70, %c0_71], %151 {strides = array<i32>} : memref<16x128xbf16, #tpu.memory_space<vmem>>, vector<16x128xbf16>,
    return
  }
  func.func @transform_0(%arg0: i32) -> (i32, i32) {
    %c0_i32 = arith.constant 0 : i32
    %c0_i32_0 = arith.constant 0 : i32
    return %arg0, %c0_i32 : i32, i32
  }
  func.func @transform_1(%arg0: i32) -> (i32, i32) {
    %c0_i32 = arith.constant 0 : i32
    %c0_i32_0 = arith.constant 0 : i32
    %c0_i32_1 = arith.constant 0 : i32
    return %c0_i32, %c0_i32_0 : i32, i32
  }
  func.func @transform_2(%arg0: i32) -> (i32, i32) {
    %c0_i32 = arith.constant 0 : i32
    %c0_i32_0 = arith.constant 0 : i32
    %c0_i32_1 = arith.constant 0 : i32
    return %c0_i32, %c0_i32_0 : i32, i32
  }
  func.func @transform_3(%arg0: i32) -> (i32, i32) {
    %c0_i32 = arith.constant 0 : i32
    %c0_i32_0 = arith.constant 0 : i32
    %c0_i32_1 = arith.constant 0 : i32
    return %c0_i32, %c0_i32_0 : i32, i32
  }
  func.func @transform_4(%arg0: i32) -> (i32, i32) {
    %c0_i32 = arith.constant 0 : i32
    %c0_i32_0 = arith.constant 0 : i32
    %c0_i32_1 = arith.constant 0 : i32
    return %c0_i32, %c0_i32_0 : i32, i32
  }
  func.func @transform_5(%arg0: i32) -> (i32, i32) {
    %c0_i32 = arith.constant 0 : i32
    %c0_i32_0 = arith.constant 0 : i32
    %c0_i32_1 = arith.constant 0 : i32
    return %c0_i32, %c0_i32_0 : i32, i32
  }
  func.func @transform_6(%arg0: i32) -> (i32, i32) {
    %c0_i32 = arith.constant 0 : i32
    %c0_i32_0 = arith.constant 0 : i32
    %c0_i32_1 = arith.constant 0 : i32
    return %c0_i32, %c0_i32_0 : i32, i32
  }
  func.func @transform_7(%arg0: i32) -> (i32, i32) {
    %c0_i32 = arith.constant 0 : i32
    %c0_i32_0 = arith.constant 0 : i32
    %c0_i32_1 = arith.constant 0 : i32
    return %c0_i32, %c0_i32_0 : i32, i32
  }
  func.func @transform_8(%arg0: i32) -> (i32, i32) {
    %c0_i32 = arith.constant 0 : i32
    %c0_i32_0 = arith.constant 0 : i32
    %c0_i32_1 = arith.constant 0 : i32
    return %c0_i32, %c0_i32_0 : i32, i32
  }
  func.func @transform_9(%arg0: i32) -> (i32, i32) {
    %c0_i32 = arith.constant 0 : i32
    %c0_i32_0 = arith.constant 0 : i32
    %c0_i32_1 = arith.constant 0 : i32
    return %c0_i32, %c0_i32_0 : i32, i32
  }
  func.func @transform_10(%arg0: i32) -> (i32, i32) {
    %c0_i32 = arith.constant 0 : i32
    %c0_i32_0 = arith.constant 0 : i32
    %c0_i32_1 = arith.constant 0 : i32
    return %c0_i32, %c0_i32_0 : i32, i32
  }
  func.func @transform_11(%arg0: i32) -> (i32, i32) {
    %c0_i32 = arith.constant 0 : i32
    %c0_i32_0 = arith.constant 0 : i32
    %c0_i32_1 = arith.constant 0 : i32
    return %c0_i32, %c0_i32_0 : i32, i32
  }
  func.func @transform_12(%arg0: i32) -> (i32, i32) {
    %c0_i32 = arith.constant 0 : i32
    %c0_i32_0 = arith.constant 0 : i32
    %c0_i32_1 = arith.constant 0 : i32
    return %c0_i32, %c0_i32_0 : i32, i32
  }
  func.func @transform_13(%arg0: i32) -> (i32, i32) {
    %c0_i32 = arith.constant 0 : i32
    %c0_i32_0 = arith.constant 0 : i32
    %c0_i32_1 = arith.constant 0 : i32
    return %c0_i32, %c0_i32_0 : i32, i32
  }
  func.func @transform_14(%arg0: i32) -> (i32, i32) {
    %c0_i32 = arith.constant 0 : i32
    %c0_i32_0 = arith.constant 0 : i32
    %c0_i32_1 = arith.constant 0 : i32
    return %c0_i32, %c0_i32_0 : i32, i32
  }
  func.func @transform_15(%arg0: i32) -> (i32, i32) {
    %c0_i32 = arith.constant 0 : i32
    %c0_i32_0 = arith.constant 0 : i32
    %c0_i32_1 = arith.constant 0 : i32
    return %c0_i32, %c0_i32_0 : i32, i32
  }
  func.func @transform_16(%arg0: i32) -> (i32, i32) {
    %c0_i32 = arith.constant 0 : i32
    %c0_i32_0 = arith.constant 0 : i32
    %c0_i32_1 = arith.constant 0 : i32
    return %c0_i32, %c0_i32_0 : i32, i32
  }
  func.func @transform_17(%arg0: i32) -> (i32, i32) {
    %c0_i32 = arith.constant 0 : i32
    %c0_i32_0 = arith.constant 0 : i32
    %c0_i32_1 = arith.constant 0 : i32
    return %c0_i32, %c0_i32_0 : i32, i32
  }
  func.func @transform_18(%arg0: i32) -> (i32, i32) {
    %c0_i32 = arith.constant 0 : i32
    %c0_i32_0 = arith.constant 0 : i32
    %c0_i32_1 = arith.constant 0 : i32
    return %c0_i32, %c0_i32_0 : i32, i32
  }
  func.func @transform_19(%arg0: i32) -> (i32, i32) {
    %c0_i32 = arith.constant 0 : i32
    %c0_i32_0 = arith.constant 0 : i32
    %c0_i32_1 = arith.constant 0 : i32
    return %c0_i32, %c0_i32_0 : i32, i32
  }
  func.func @transform_20(%arg0: i32) -> (i32, i32) {
    %c0_i32 = arith.constant 0 : i32
    %c0_i32_0 = arith.constant 0 : i32
    %c0_i32_1 = arith.constant 0 : i32
    return %c0_i32, %c0_i32_0 : i32, i32
  }
  func.func @transform_21(%arg0: i32) -> (i32, i32) {
    %c0_i32 = arith.constant 0 : i32
    %c0_i32_0 = arith.constant 0 : i32
    return %arg0, %c0_i32 : i32, i32
  }
}

</mosaic_0001>

<llo_original>
// kernel: transformer_ff_stack.1
$region0: #{transformer_ff_stack.1}
  #allocation0 [shape = 'u32[]', space=smem, size = 0x4, offset = 0x4, fixed_abs, tag = 'smem constant byte address 0x4 - core index']
  #allocation1 [shape = 'u32[144,128]{1,0:T(1,128)}', space=vmem, size = 0x12000, scoped, tag = 'internal scratch']
  %s0 = inlined_call_operand.vmem [shape: f32[16,32], index: 0, kind: input, shape index: {}]
  %s1 = inlined_call_operand.vmem [shape: f32[1,32], index: 1, kind: input, shape index: {}]
  %s2 = inlined_call_operand.vmem [shape: f32[1,32], index: 2, kind: input, shape index: {}]
  %s3 = inlined_call_operand.vmem [shape: bf16[32,32], index: 3, kind: input, shape index: {}]
  %s4 = inlined_call_operand.vmem [shape: f32[1,32], index: 4, kind: input, shape index: {}]
  %s5 = inlined_call_operand.vmem [shape: f32[1,32], index: 5, kind: input, shape index: {}]
  %s6 = inlined_call_operand.vmem [shape: f32[1,32], index: 6, kind: input, shape index: {}]
  %s7 = inlined_call_operand.vmem [shape: bf16[32,64], index: 7, kind: input, shape index: {}]
  %s8 = inlined_call_operand.vmem [shape: f32[1,64], index: 8, kind: input, shape index: {}]
  %s9 = inlined_call_operand.vmem [shape: bf16[64,32], index: 9, kind: input, shape index: {}]
  %s10 = inlined_call_operand.vmem [shape: f32[1,32], index: 10, kind: input, shape index: {}]
  %s11 = inlined_call_operand.vmem [shape: f32[1,32], index: 11, kind: input, shape index: {}]
  %s12 = inlined_call_operand.vmem [shape: f32[1,32], index: 12, kind: input, shape index: {}]
  %s13 = inlined_call_operand.vmem [shape: bf16[32,64], index: 13, kind: input, shape index: {}]
  %s14 = inlined_call_operand.vmem [shape: f32[1,64], index: 14, kind: input, shape index: {}]
  %s15 = inlined_call_operand.vmem [shape: bf16[64,32], index: 15, kind: input, shape index: {}]
  %s16 = inlined_call_operand.vmem [shape: f32[1,32], index: 16, kind: input, shape index: {}]
  %s17 = inlined_call_operand.vmem [shape: f32[1,32], index: 17, kind: input, shape index: {}]
  %s18 = inlined_call_operand.vmem [shape: f32[1,32], index: 18, kind: input, shape index: {}]
  %s19 = inlined_call_operand.vmem [shape: bf16[32,128], index: 19, kind: input, shape index: {}]
  %s20 = inlined_call_operand.vmem [shape: f32[1,128], index: 20, kind: input, shape index: {}]
  %s21 = inlined_call_operand.vmem [shape: bf16[16,128], index: 21, kind: output, shape index: {}]
  %s22 = sld [smem:[#allocation0]]
  $region94: #{transformer_ff_stack.1} parent=0
    _
  %s24 = ssub.s32 1, %s22
  %s25 = scalar_select 0, %s24, %s22
  // Predicated region
  $region2: #{transformer_ff_stack.1} parent=0 // pred_check
    _
  $region3: #{transformer_ff_stack.1} parent=0 // pred_check_branch
    %27 = sbr.rel (0) target = $region5
  $region4: #{transformer_ff_stack.1} parent=0 // pred_region
    _
  $region5: #{transformer_ff_stack.1} parent=0 // pred_fallthru
    _
  // Predicated region
  $region6: #{transformer_ff_stack.1} parent=0 // pred_check
    _
  $region7: #{transformer_ff_stack.1} parent=0 // pred_check_branch
    %29 = sbr.rel (0) target = $region9
  $region8: #{transformer_ff_stack.1} parent=0 // pred_region
    _
  $region9: #{transformer_ff_stack.1} parent=0 // pred_fallthru
    _
  // Predicated region
  $region10: #{transformer_ff_stack.1} parent=0 // pred_check
    _
  $region11: #{transformer_ff_stack.1} parent=0 // pred_check_branch
    %31 = sbr.rel (0) target = $region13
  $region12: #{transformer_ff_stack.1} parent=0 // pred_region
    _
  $region13: #{transformer_ff_stack.1} parent=0 // pred_fallthru
    _
  // Predicated region
  $region14: #{transformer_ff_stack.1} parent=0 // pred_check
    _
  $region15: #{transformer_ff_stack.1} parent=0 // pred_check_branch
    %33 = sbr.rel (0) target = $region17
  $region16: #{transformer_ff_stack.1} parent=0 // pred_region
    _
  $region17: #{transformer_ff_stack.1} parent=0 // pred_fallthru
    _
  // Predicated region
  $region18: #{transformer_ff_stack.1} parent=0 // pred_check
    _
  $region19: #{transformer_ff_stack.1} parent=0 // pred_check_branch
    %35 = sbr.rel (0) target = $region21
  $region20: #{transformer_ff_stack.1} parent=0 // pred_region
    _
  $region21: #{transformer_ff_stack.1} parent=0 // pred_fallthru
    _
  // Predicated region
  $region22: #{transformer_ff_stack.1} parent=0 // pred_check
    _
  $region23: #{transformer_ff_stack.1} parent=0 // pred_check_branch
    %37 = sbr.rel (0) target = $region25
  $region24: #{transformer_ff_stack.1} parent=0 // pred_region
    _
  $region25: #{transformer_ff_stack.1} parent=0 // pred_fallthru
    _
  // Predicated region
  $region26: #{transformer_ff_stack.1} parent=0 // pred_check
    _
  $region27: #{transformer_ff_stack.1} parent=0 // pred_check_branch
    %39 = sbr.rel (0) target = $region29
  $region28: #{transformer_ff_stack.1} parent=0 // pred_region
    _
  $region29: #{transformer_ff_stack.1} parent=0 // pred_fallthru
    _
  // Predicated region
  $region30: #{transformer_ff_stack.1} parent=0 // pred_check
    _
  $region31: #{transformer_ff_stack.1} parent=0 // pred_check_branch
    %41 = sbr.rel (0) target = $region33
  $region32: #{transformer_ff_stack.1} parent=0 // pred_region
    _
  $region33: #{transformer_ff_stack.1} parent=0 // pred_fallthru
    _
  // Predicated region
  $region34: #{transformer_ff_stack.1} parent=0 // pred_check
    _
  $region35: #{transformer_ff_stack.1} parent=0 // pred_check_branch
    %43 = sbr.rel (0) target = $region37
  $region36: #{transformer_ff_stack.1} parent=0 // pred_region
    _
  $region37: #{transformer_ff_stack.1} parent=0 // pred_fallthru
    _
  // Predicated region
  $region38: #{transformer_ff_stack.1} parent=0 // pred_check
    _
  $region39: #{transformer_ff_stack.1} parent=0 // pred_check_branch
    %45 = sbr.rel (0) target = $region41
  $region40: #{transformer_ff_stack.1} parent=0 // pred_region
    _
  $region41: #{transformer_ff_stack.1} parent=0 // pred_fallthru
    _
  // Predicated region
  $region42: #{transformer_ff_stack.1} parent=0 // pred_check
    _
  $region43: #{transformer_ff_stack.1} parent=0 // pred_check_branch
    %47 = sbr.rel (0) target = $region45
  $region44: #{transformer_ff_stack.1} parent=0 // pred_region
    _
  $region45: #{transformer_ff_stack.1} parent=0 // pred_fallthru
    _
  // Predicated region
  $region46: #{transformer_ff_stack.1} parent=0 // pred_check
    _
  $region47: #{transformer_ff_stack.1} parent=0 // pred_check_branch
    %49 = sbr.rel (0) target = $region49
  $region48: #{transformer_ff_stack.1} parent=0 // pred_region
    _
  $region49: #{transformer_ff_stack.1} parent=0 // pred_fallthru
    _
  // Predicated region
  $region50: #{transformer_ff_stack.1} parent=0 // pred_check
    _
  $region51: #{transformer_ff_stack.1} parent=0 // pred_check_branch
    %51 = sbr.rel (0) target = $region53
  $region52: #{transformer_ff_stack.1} parent=0 // pred_region
    _
  $region53: #{transformer_ff_stack.1} parent=0 // pred_fallthru
    _
  // Predicated region
  $region54: #{transformer_ff_stack.1} parent=0 // pred_check
    _
  $region55: #{transformer_ff_stack.1} parent=0 // pred_check_branch
    %53 = sbr.rel (0) target = $region57
  $region56: #{transformer_ff_stack.1} parent=0 // pred_region
    _
  $region57: #{transformer_ff_stack.1} parent=0 // pred_fallthru
    _
  // Predicated region
  $region58: #{transformer_ff_stack.1} parent=0 // pred_check
    _
  $region59: #{transformer_ff_stack.1} parent=0 // pred_check_branch
    %55 = sbr.rel (0) target = $region61
  $region60: #{transformer_ff_stack.1} parent=0 // pred_region
    _
  $region61: #{transformer_ff_stack.1} parent=0 // pred_fallthru
    _
  // Predicated region
  $region62: #{transformer_ff_stack.1} parent=0 // pred_check
    _
  $region63: #{transformer_ff_stack.1} parent=0 // pred_check_branch
    %57 = sbr.rel (0) target = $region65
  $region64: #{transformer_ff_stack.1} parent=0 // pred_region
    _
  $region65: #{transformer_ff_stack.1} parent=0 // pred_fallthru
    _
  // Predicated region
  $region66: #{transformer_ff_stack.1} parent=0 // pred_check
    _
  $region67: #{transformer_ff_stack.1} parent=0 // pred_check_branch
    %59 = sbr.rel (0) target = $region69
  $region68: #{transformer_ff_stack.1} parent=0 // pred_region
    _
  $region69: #{transformer_ff_stack.1} parent=0 // pred_fallthru
    _
  // Predicated region
  $region70: #{transformer_ff_stack.1} parent=0 // pred_check
    _
  $region71: #{transformer_ff_stack.1} parent=0 // pred_check_branch
    %61 = sbr.rel (0) target = $region73
  $region72: #{transformer_ff_stack.1} parent=0 // pred_region
    _
  $region73: #{transformer_ff_stack.1} parent=0 // pred_fallthru
    _
  // Predicated region
  $region74: #{transformer_ff_stack.1} parent=0 // pred_check
    _
  $region75: #{transformer_ff_stack.1} parent=0 // pred_check_branch
    %63 = sbr.rel (0) target = $region77
  $region76: #{transformer_ff_stack.1} parent=0 // pred_region
    _
  $region77: #{transformer_ff_stack.1} parent=0 // pred_fallthru
    _
  // Predicated region
  $region78: #{transformer_ff_stack.1} parent=0 // pred_check
    _
  $region79: #{transformer_ff_stack.1} parent=0 // pred_check_branch
    %65 = sbr.rel (0) target = $region81
  $region80: #{transformer_ff_stack.1} parent=0 // pred_region
    _
  $region81: #{transformer_ff_stack.1} parent=0 // pred_fallthru
    _
  // Predicated region
  $region82: #{transformer_ff_stack.1} parent=0 // pred_check
    _
  $region83: #{transformer_ff_stack.1} parent=0 // pred_check_branch
    %67 = sbr.rel (0) target = $region85
  $region84: #{transformer_ff_stack.1} parent=0 // pred_region
    _
  $region85: #{transformer_ff_stack.1} parent=0 // pred_fallthru
    _
  %v69 = vld [vmem:[%s0] sm:$0xff]
  %v70 = vld [vmem:[%s0 + $0x8] sm:$0xff]
  %v71 = vld [vmem:[%s1] sm:$0x1]
  %v72 = vld [vmem:[%s2] sm:$0x1]
  %vm73 = vcmask 261120
  %v74 = vsel %vm73, %v69, 0.0
  %75 = vadd.xlane.f32.xlu0 %v74
  %v76 = vpop.xlane.xlu0 %75
  %v77 = vsel %vm73, %v70, 0.0
  %78 = vadd.xlane.f32.xlu0 %v77
  %v79 = vpop.xlane.xlu0 %78
  %v80 = vrcp.pop 32.0
  %v81 = vmul.f32 %v76, %v80
  %v82 = vmul.f32 %v79, %v80
  %v83 = vsub.f32 %v69, %v81
  %v84 = vsub.f32 %v70, %v82
  %v85 = vmul.f32 %v83, %v83
  %v86 = vmul.f32 %v84, %v84
  %v87 = vsel %vm73, %v85, 0.0
  %88 = vadd.xlane.f32.xlu0 %v87
  %v89 = vpop.xlane.xlu0 %88
  %v90 = vsel %vm73, %v86, 0.0
  %91 = vadd.xlane.f32.xlu0 %v90
  %v92 = vpop.xlane.xlu0 %91
  %v93 = vmul.f32 %v89, %v80
  %v94 = vmul.f32 %v92, %v80
  %v95 = vadd.f32 %v93, 1e-05
  %v96 = vadd.f32 %v94, 1e-05
  %v97 = vrsqrt.pop %v95
  %v98 = vrsqrt.pop %v96
  %v99 = vmul.f32 %v83, %v97
  %v100 = vmul.f32 %v84, %v98
  %v102 = vlaneseq
  %v103 = vshrl.u32 %v102, 7
  %v104 = vsub.s32 0, %v103
  %v105 = vrot.slane %v71, %v104
  %v107 = vmul.f32 %v99, %v105
  %v108 = vmul.f32 %v100, %v105
  %v110 = vlaneseq
  %v111 = vshrl.u32 %v110, 7
  %v112 = vsub.s32 0, %v111
  %v113 = vrot.slane %v72, %v112
  %v115 = vadd.f32 %v107, %v113
  %v116 = vadd.f32 %v108, %v113
  %v117 = vpack.c.bf16 %v116, %v115
  %v118 = vld [vmem:[%s3] sm:$0xf]
  %v119 = vld [vmem:[%s3 + $0x4] sm:$0xf]
  %v120 = vld [vmem:[%s3 + $0x8] sm:$0xf]
  %v121 = vld [vmem:[%s3 + $0xc] sm:$0xf]
  %v122 = vld [vmem:[%s4] sm:$0x1]
  %v124 = vlaneseq
  %v125 = vshrl.u32 %v124, 7
  %v126 = vsub.s32 0, %v125
  %v127 = vrot.slane %v122, %v126
  %v133 = vunpack.c.l.b16 %v118
  %v134 = vunpack.c.l.b16 %v119
  %v135 = vunpack.c.l.b16 %v120
  %v136 = vunpack.c.l.b16 %v121
  %v137 = vpack.c.b16 %v134, %v133
  %v138 = vpack.c.b16 %v136, %v135
  %v142 = vsel %vm73, %v117, 0
  %144 = vmatprep.subr.bf16.mxu0 0
  %145 = vmatpush1.bf16.msra.mxu0 0
  %146 = vmatprep.subr.bf16.mxu0 0
  %147 = vmatpush1.bf16.msra.mxu0 0
  %148 = vmatprep.subr.bf16.mxu0 0
  %149 = vmatpush1.bf16.msra.mxu0 0
  %150 = vmatprep.subr.bf16.mxu0 0
  %151 = vmatpush1.bf16.msra.mxu0 0
  %152 = vmatprep.subr.bf16.mxu0 0
  %153 = vmatpush1.bf16.msra.mxu0 0
  %154 = vmatprep.subr.bf16.mxu0 0
  %155 = vmatpush1.bf16.msra.mxu0 0
  %156 = vmatprep.subr.bf16.mxu0 0
  %157 = vmatpush1.bf16.msra.mxu0 %v138
  %158 = vmatprep.subr.bf16.mxu0 0
  %159 = vmatpush1.bf16.msra.mxu0 %v137
  %160 = vmatprep.subr.bf16.mxu0 0
  %161 = vmatpush2.bf16.msra.mxu0 0
  %162 = vmatprep.subr.bf16.mxu0 0
  %163 = vmatpush2.bf16.msra.mxu0 0
  %164 = vmatprep.subr.bf16.mxu0 0
  %165 = vmatpush2.bf16.msra.mxu0 0
  %166 = vmatprep.subr.bf16.mxu0 0
  %167 = vmatpush2.bf16.msra.mxu0 0
  %168 = vmatprep.subr.bf16.mxu0 0
  %169 = vmatpush2.bf16.msra.mxu0 0
  %170 = vmatprep.subr.bf16.mxu0 0
  %171 = vmatpush2.bf16.msra.mxu0 0
  %172 = vmatprep.subr.bf16.mxu0 0
  %173 = vmatpush2.bf16.msra.mxu0 0
  %174 = vmatprep.subr.bf16.mxu0 0
  %175 = vmatpush2.bf16.msra.mxu0 0
  %176 = vmatprep.mubr.bf16.mxu0 0
  %177 = vmatmul.mubr.bf16.gmra.mxu0 %v142
  %v178 = vpop.f32.mrf.mxu0
  %v179 = vadd.f32 %v127, %v178
  %v180 = vpop.f32.mrf.mxu0
  %v181 = vpop.f32.mrf.mxu0
  %v182 = vadd.f32 %v127, %v181
  %v183 = vpop.f32.mrf.mxu0
  %184 = vdwg.mxu0
  %v185 = vld [vmem:[%s5] sm:$0x1]
  %v186 = vld [vmem:[%s6] sm:$0x1]
  %v187 = vsel %vm73, %v179, 0.0
  %188 = vadd.xlane.f32.xlu0 %v187
  %v189 = vpop.xlane.xlu0 %188
  %v190 = vsel %vm73, %v182, 0.0
  %191 = vadd.xlane.f32.xlu0 %v190
  %v192 = vpop.xlane.xlu0 %191
  %v193 = vmul.f32 %v189, %v80
  %v194 = vmul.f32 %v192, %v80
  %v195 = vsub.f32 %v179, %v193
  %v196 = vsub.f32 %v182, %v194
  %v197 = vmul.f32 %v195, %v195
  %v198 = vmul.f32 %v196, %v196
  %v199 = vsel %vm73, %v197, 0.0
  %200 = vadd.xlane.f32.xlu0 %v199
  %v201 = vpop.xlane.xlu0 %200
  %v202 = vsel %vm73, %v198, 0.0
  %203 = vadd.xlane.f32.xlu0 %v202
  %v204 = vpop.xlane.xlu0 %203
  %v205 = vmul.f32 %v201, %v80
  %v206 = vmul.f32 %v204, %v80
  %v207 = vadd.f32 %v205, 1e-05
  %v208 = vadd.f32 %v206, 1e-05
  %v209 = vrsqrt.pop %v207
  %v210 = vrsqrt.pop %v208
  %v211 = vmul.f32 %v195, %v209
  %v212 = vmul.f32 %v196, %v210
  %v214 = vlaneseq
  %v215 = vshrl.u32 %v214, 7
  %v216 = vsub.s32 0, %v215
  %v217 = vrot.slane %v185, %v216
  %v219 = vmul.f32 %v211, %v217
  %v220 = vmul.f32 %v212, %v217
  %v222 = vlaneseq
  %v223 = vshrl.u32 %v222, 7
  %v224 = vsub.s32 0, %v223
  %v225 = vrot.slane %v186, %v224
  %v227 = vadd.f32 %v219, %v225
  %v228 = vadd.f32 %v220, %v225
  %v229 = vpack.c.bf16 %v228, %v227
  %v230 = vld [vmem:[%s7] sm:$0xf]
  %v231 = vld [vmem:[%s7 + $0x4] sm:$0xf]
  %v232 = vld [vmem:[%s7 + $0x8] sm:$0xf]
  %v233 = vld [vmem:[%s7 + $0xc] sm:$0xf]
  %v234 = vld [vmem:[%s8] sm:$0x1]
  %v236 = vlaneseq
  %v237 = vshrl.u32 %v236, 7
  %v238 = vsub.s32 0, %v237
  %v239 = vrot.slane %v234, %v238
  %v245 = vunpack.c.l.b16 %v230
  %v246 = vunpack.c.l.b16 %v231
  %v247 = vunpack.c.l.b16 %v232
  %v248 = vunpack.c.l.b16 %v233
  %v249 = vpack.c.b16 %v246, %v245
  %v250 = vpack.c.b16 %v248, %v247
  %v254 = vsel %vm73, %v229, 0
  %256 = vmatprep.subr.bf16.mxu0 0
  %257 = vmatpush1.bf16.msra.mxu0 0
  %258 = vmatprep.subr.bf16.mxu0 0
  %259 = vmatpush1.bf16.msra.mxu0 0
  %260 = vmatprep.subr.bf16.mxu0 0
  %261 = vmatpush1.bf16.msra.mxu0 0
  %262 = vmatprep.subr.bf16.mxu0 0
  %263 = vmatpush1.bf16.msra.mxu0 0
  %264 = vmatprep.subr.bf16.mxu0 0
  %265 = vmatpush1.bf16.msra.mxu0 0
  %266 = vmatprep.subr.bf16.mxu0 0
  %267 = vmatpush1.bf16.msra.mxu0 0
  %268 = vmatprep.subr.bf16.mxu0 0
  %269 = vmatpush1.bf16.msra.mxu0 %v250
  %270 = vmatprep.subr.bf16.mxu0 0
  %271 = vmatpush1.bf16.msra.mxu0 %v249
  %272 = vmatprep.subr.bf16.mxu0 0
  %273 = vmatpush2.bf16.msra.mxu0 0
  %274 = vmatprep.subr.bf16.mxu0 0
  %275 = vmatpush2.bf16.msra.mxu0 0
  %276 = vmatprep.subr.bf16.mxu0 0
  %277 = vmatpush2.bf16.msra.mxu0 0
  %278 = vmatprep.subr.bf16.mxu0 0
  %279 = vmatpush2.bf16.msra.mxu0 0
  %280 = vmatprep.subr.bf16.mxu0 0
  %281 = vmatpush2.bf16.msra.mxu0 0
  %282 = vmatprep.subr.bf16.mxu0 0
  %283 = vmatpush2.bf16.msra.mxu0 0
  %284 = vmatprep.subr.bf16.mxu0 0
  %285 = vmatpush2.bf16.msra.mxu0 0
  %286 = vmatprep.subr.bf16.mxu0 0
  %287 = vmatpush2.bf16.msra.mxu0 0
  %288 = vmatprep.mubr.bf16.mxu0 0
  %289 = vmatmul.mubr.bf16.gmra.mxu0 %v254
  %v290 = vpop.f32.mrf.mxu0
  %v291 = vadd.f32 %v239, %v290
  %v292 = vpop.f32.mrf.mxu0
  %v293 = vpop.f32.mrf.mxu0
  %v294 = vadd.f32 %v239, %v293
  %v295 = vpop.f32.mrf.mxu0
  %296 = vdwg.mxu0
  %v297 = vmax.f32 %v291, 0.0
  %v298 = vmax.f32 %v294, 0.0
  %v299 = vpack.c.bf16 %v298, %v297
  %v300 = vld [vmem:[%s9] sm:$0xf]
  %v301 = vld [vmem:[%s9 + $0x4] sm:$0xf]
  %v302 = vld [vmem:[%s9 + $0x8] sm:$0xf]
  %v303 = vld [vmem:[%s9 + $0xc] sm:$0xf]
  %v304 = vld [vmem:[%s9 + $0x10] sm:$0xf]
  %v305 = vld [vmem:[%s9 + $0x14] sm:$0xf]
  %v306 = vld [vmem:[%s9 + $0x18] sm:$0xf]
  %v307 = vld [vmem:[%s9 + $0x1c] sm:$0xf]
  %v308 = vld [vmem:[%s10] sm:$0x1]
  %v310 = vlaneseq
  %v311 = vshrl.u32 %v310, 7
  %v312 = vsub.s32 0, %v311
  %v313 = vrot.slane %v308, %v312
  %v323 = vunpack.c.l.b16 %v300
  %v324 = vunpack.c.l.b16 %v301
  %v325 = vunpack.c.l.b16 %v302
  %v326 = vunpack.c.l.b16 %v303
  %v327 = vunpack.c.l.b16 %v304
  %v328 = vunpack.c.l.b16 %v305
  %v329 = vunpack.c.l.b16 %v306
  %v330 = vunpack.c.l.b16 %v307
  %v331 = vpack.c.b16 %v324, %v323
  %v332 = vpack.c.b16 %v326, %v325
  %v333 = vpack.c.b16 %v328, %v327
  %v334 = vpack.c.b16 %v330, %v329
  %vm339 = vcmask 523264
  %v341 = vsel %vm339, %v299, 0
  %343 = vmatprep.subr.bf16.mxu0 0
  %344 = vmatpush1.bf16.msra.mxu0 0
  %345 = vmatprep.subr.bf16.mxu0 0
  %346 = vmatpush1.bf16.msra.mxu0 0
  %347 = vmatprep.subr.bf16.mxu0 0
  %348 = vmatpush1.bf16.msra.mxu0 0
  %349 = vmatprep.subr.bf16.mxu0 0
  %350 = vmatpush1.bf16.msra.mxu0 0
  %351 = vmatprep.subr.bf16.mxu0 0
  %352 = vmatpush1.bf16.msra.mxu0 %v334
  %353 = vmatprep.subr.bf16.mxu0 0
  %354 = vmatpush1.bf16.msra.mxu0 %v333
  %355 = vmatprep.subr.bf16.mxu0 0
  %356 = vmatpush1.bf16.msra.mxu0 %v332
  %357 = vmatprep.subr.bf16.mxu0 0
  %358 = vmatpush1.bf16.msra.mxu0 %v331
  %359 = vmatprep.subr.bf16.mxu0 0
  %360 = vmatpush2.bf16.msra.mxu0 0
  %361 = vmatprep.subr.bf16.mxu0 0
  %362 = vmatpush2.bf16.msra.mxu0 0
  %363 = vmatprep.subr.bf16.mxu0 0
  %364 = vmatpush2.bf16.msra.mxu0 0
  %365 = vmatprep.subr.bf16.mxu0 0
  %366 = vmatpush2.bf16.msra.mxu0 0
  %367 = vmatprep.subr.bf16.mxu0 0
  %368 = vmatpush2.bf16.msra.mxu0 0
  %369 = vmatprep.subr.bf16.mxu0 0
  %370 = vmatpush2.bf16.msra.mxu0 0
  %371 = vmatprep.subr.bf16.mxu0 0
  %372 = vmatpush2.bf16.msra.mxu0 0
  %373 = vmatprep.subr.bf16.mxu0 0
  %374 = vmatpush2.bf16.msra.mxu0 0
  %375 = vmatprep.mubr.bf16.mxu0 0
  %376 = vmatmul.mubr.bf16.gmra.mxu0 %v341
  %v377 = vpop.f32.mrf.mxu0
  %v378 = vadd.f32 %v313, %v377
  %v379 = vpop.f32.mrf.mxu0
  %v380 = vpop.f32.mrf.mxu0
  %v381 = vadd.f32 %v313, %v380
  %v382 = vpop.f32.mrf.mxu0
  %383 = vdwg.mxu0
  %v384 = vadd.f32 %v378, %v179
  %v385 = vadd.f32 %v381, %v182
  %v386 = vld [vmem:[%s11] sm:$0x1]
  %v387 = vld [vmem:[%s12] sm:$0x1]
  %v388 = vsel %vm73, %v384, 0.0
  %389 = vadd.xlane.f32.xlu0 %v388
  %v390 = vpop.xlane.xlu0 %389
  %v391 = vsel %vm73, %v385, 0.0
  %392 = vadd.xlane.f32.xlu0 %v391
  %v393 = vpop.xlane.xlu0 %392
  %v394 = vmul.f32 %v390, %v80
  %v395 = vmul.f32 %v393, %v80
  %v396 = vsub.f32 %v384, %v394
  %v397 = vsub.f32 %v385, %v395
  %v398 = vmul.f32 %v396, %v396
  %v399 = vmul.f32 %v397, %v397
  %v400 = vsel %vm73, %v398, 0.0
  %401 = vadd.xlane.f32.xlu0 %v400
  %v402 = vpop.xlane.xlu0 %401
  %v403 = vsel %vm73, %v399, 0.0
  %404 = vadd.xlane.f32.xlu0 %v403
  %v405 = vpop.xlane.xlu0 %404
  %v406 = vmul.f32 %v402, %v80
  %v407 = vmul.f32 %v405, %v80
  %v408 = vadd.f32 %v406, 1e-05
  %v409 = vadd.f32 %v407, 1e-05
  %v410 = vrsqrt.pop %v408
  %v411 = vrsqrt.pop %v409
  %v412 = vmul.f32 %v396, %v410
  %v413 = vmul.f32 %v397, %v411
  %v415 = vlaneseq
  %v416 = vshrl.u32 %v415, 7
  %v417 = vsub.s32 0, %v416
  %v418 = vrot.slane %v386, %v417
  %v420 = vmul.f32 %v412, %v418
  %v421 = vmul.f32 %v413, %v418
  %v423 = vlaneseq
  %v424 = vshrl.u32 %v423, 7
  %v425 = vsub.s32 0, %v424
  %v426 = vrot.slane %v387, %v425
  %v428 = vadd.f32 %v420, %v426
  %v429 = vadd.f32 %v421, %v426
  %v430 = vpack.c.bf16 %v429, %v428
  %v431 = vld [vmem:[%s13] sm:$0xf]
  %v432 = vld [vmem:[%s13 + $0x4] sm:$0xf]
  %v433 = vld [vmem:[%s13 + $0x8] sm:$0xf]
  %v434 = vld [vmem:[%s13 + $0xc] sm:$0xf]
  %v435 = vld [vmem:[%s14] sm:$0x1]
  %v437 = vlaneseq
  %v438 = vshrl.u32 %v437, 7
  %v439 = vsub.s32 0, %v438
  %v440 = vrot.slane %v435, %v439
  %v446 = vunpack.c.l.b16 %v431
  %v447 = vunpack.c.l.b16 %v432
  %v448 = vunpack.c.l.b16 %v433
  %v449 = vunpack.c.l.b16 %v434
  %v450 = vpack.c.b16 %v447, %v446
  %v451 = vpack.c.b16 %v449, %v448
  %v455 = vsel %vm73, %v430, 0
  %457 = vmatprep.subr.bf16.mxu0 0
  %458 = vmatpush1.bf16.msra.mxu0 0
  %459 = vmatprep.subr.bf16.mxu0 0
  %460 = vmatpush1.bf16.msra.mxu0 0
  %461 = vmatprep.subr.bf16.mxu0 0
  %462 = vmatpush1.bf16.msra.mxu0 0
  %463 = vmatprep.subr.bf16.mxu0 0
  %464 = vmatpush1.bf16.msra.mxu0 0
  %465 = vmatprep.subr.bf16.mxu0 0
  %466 = vmatpush1.bf16.msra.mxu0 0
  %467 = vmatprep.subr.bf16.mxu0 0
  %468 = vmatpush1.bf16.msra.mxu0 0
  %469 = vmatprep.subr.bf16.mxu0 0
  %470 = vmatpush1.bf16.msra.mxu0 %v451
  %471 = vmatprep.subr.bf16.mxu0 0
  %472 = vmatpush1.bf16.msra.mxu0 %v450
  %473 = vmatprep.subr.bf16.mxu0 0
  %474 = vmatpush2.bf16.msra.mxu0 0
  %475 = vmatprep.subr.bf16.mxu0 0
  %476 = vmatpush2.bf16.msra.mxu0 0
  %477 = vmatprep.subr.bf16.mxu0 0
  %478 = vmatpush2.bf16.msra.mxu0 0
  %479 = vmatprep.subr.bf16.mxu0 0
  %480 = vmatpush2.bf16.msra.mxu0 0
  %481 = vmatprep.subr.bf16.mxu0 0
  %482 = vmatpush2.bf16.msra.mxu0 0
  %483 = vmatprep.subr.bf16.mxu0 0
  %484 = vmatpush2.bf16.msra.mxu0 0
  %485 = vmatprep.subr.bf16.mxu0 0
  %486 = vmatpush2.bf16.msra.mxu0 0
  %487 = vmatprep.subr.bf16.mxu0 0
  %488 = vmatpush2.bf16.msra.mxu0 0
  %489 = vmatprep.mubr.bf16.mxu0 0
  %490 = vmatmul.mubr.bf16.gmra.mxu0 %v455
  %v491 = vpop.f32.mrf.mxu0
  %v492 = vadd.f32 %v440, %v491
  %v493 = vpop.f32.mrf.mxu0
  %v494 = vpop.f32.mrf.mxu0
  %v495 = vadd.f32 %v440, %v494
  %v496 = vpop.f32.mrf.mxu0
  %497 = vdwg.mxu0
  %v498 = vmax.f32 %v492, 0.0
  %v499 = vmax.f32 %v495, 0.0
  %v500 = vpack.c.bf16 %v499, %v498
  %v501 = vld [vmem:[%s15] sm:$0xf]
  %v502 = vld [vmem:[%s15 + $0x4] sm:$0xf]
  %v503 = vld [vmem:[%s15 + $0x8] sm:$0xf]
  %v504 = vld [vmem:[%s15 + $0xc] sm:$0xf]
  %v505 = vld [vmem:[%s15 + $0x10] sm:$0xf]
  %v506 = vld [vmem:[%s15 + $0x14] sm:$0xf]
  %v507 = vld [vmem:[%s15 + $0x18] sm:$0xf]
  %v508 = vld [vmem:[%s15 + $0x1c] sm:$0xf]
  %v509 = vld [vmem:[%s16] sm:$0x1]
  %v511 = vlaneseq
  %v512 = vshrl.u32 %v511, 7
  %v513 = vsub.s32 0, %v512
  %v514 = vrot.slane %v509, %v513
  %v524 = vunpack.c.l.b16 %v501
  %v525 = vunpack.c.l.b16 %v502
  %v526 = vunpack.c.l.b16 %v503
  %v527 = vunpack.c.l.b16 %v504
  %v528 = vunpack.c.l.b16 %v505
  %v529 = vunpack.c.l.b16 %v506
  %v530 = vunpack.c.l.b16 %v507
  %v531 = vunpack.c.l.b16 %v508
  %v532 = vpack.c.b16 %v525, %v524
  %v533 = vpack.c.b16 %v527, %v526
  %v534 = vpack.c.b16 %v529, %v528
  %v535 = vpack.c.b16 %v531, %v530
  %v541 = vsel %vm339, %v500, 0
  %543 = vmatprep.subr.bf16.mxu0 0
  %544 = vmatpush1.bf16.msra.mxu0 0
  %545 = vmatprep.subr.bf16.mxu0 0
  %546 = vmatpush1.bf16.msra.mxu0 0
  %547 = vmatprep.subr.bf16.mxu0 0
  %548 = vmatpush1.bf16.msra.mxu0 0
  %549 = vmatprep.subr.bf16.mxu0 0
  %550 = vmatpush1.bf16.msra.mxu0 0
  %551 = vmatprep.subr.bf16.mxu0 0
  %552 = vmatpush1.bf16.msra.mxu0 %v535
  %553 = vmatprep.subr.bf16.mxu0 0
  %554 = vmatpush1.bf16.msra.mxu0 %v534
  %555 = vmatprep.subr.bf16.mxu0 0
  %556 = vmatpush1.bf16.msra.mxu0 %v533
  %557 = vmatprep.subr.bf16.mxu0 0
  %558 = vmatpush1.bf16.msra.mxu0 %v532
  %559 = vmatprep.subr.bf16.mxu0 0
  %560 = vmatpush2.bf16.msra.mxu0 0
  %561 = vmatprep.subr.bf16.mxu0 0
  %562 = vmatpush2.bf16.msra.mxu0 0
  %563 = vmatprep.subr.bf16.mxu0 0
  %564 = vmatpush2.bf16.msra.mxu0 0
  %565 = vmatprep.subr.bf16.mxu0 0
  %566 = vmatpush2.bf16.msra.mxu0 0
  %567 = vmatprep.subr.bf16.mxu0 0
  %568 = vmatpush2.bf16.msra.mxu0 0
  %569 = vmatprep.subr.bf16.mxu0 0
  %570 = vmatpush2.bf16.msra.mxu0 0
  %571 = vmatprep.subr.bf16.mxu0 0
  %572 = vmatpush2.bf16.msra.mxu0 0
  %573 = vmatprep.subr.bf16.mxu0 0
  %574 = vmatpush2.bf16.msra.mxu0 0
  %575 = vmatprep.mubr.bf16.mxu0 0
  %576 = vmatmul.mubr.bf16.gmra.mxu0 %v541
  %v577 = vpop.f32.mrf.mxu0
  %v578 = vadd.f32 %v514, %v577
  %v579 = vpop.f32.mrf.mxu0
  %v580 = vpop.f32.mrf.mxu0
  %v581 = vadd.f32 %v514, %v580
  %v582 = vpop.f32.mrf.mxu0
  %583 = vdwg.mxu0
  %v584 = vadd.f32 %v578, %v384
  %v585 = vadd.f32 %v581, %v385
  %v586 = vld [vmem:[%s17] sm:$0x1]
  %v587 = vld [vmem:[%s18] sm:$0x1]
  %v588 = vsel %vm73, %v584, 0.0
  %589 = vadd.xlane.f32.xlu0 %v588
  %v590 = vpop.xlane.xlu0 %589
  %v591 = vsel %vm73, %v585, 0.0
  %592 = vadd.xlane.f32.xlu0 %v591
  %v593 = vpop.xlane.xlu0 %592
  %v594 = vmul.f32 %v590, %v80
  %v595 = vmul.f32 %v593, %v80
  %v596 = vsub.f32 %v584, %v594
  %v597 = vsub.f32 %v585, %v595
  %v598 = vmul.f32 %v596, %v596
  %v599 = vmul.f32 %v597, %v597
  %v600 = vsel %vm73, %v598, 0.0
  %601 = vadd.xlane.f32.xlu0 %v600
  %v602 = vpop.xlane.xlu0 %601
  %v603 = vsel %vm73, %v599, 0.0
  %604 = vadd.xlane.f32.xlu0 %v603
  %v605 = vpop.xlane.xlu0 %604
  %v606 = vmul.f32 %v602, %v80
  %v607 = vmul.f32 %v605, %v80
  %v608 = vadd.f32 %v606, 1e-05
  %v609 = vadd.f32 %v607, 1e-05
  %v610 = vrsqrt.pop %v608
  %v611 = vrsqrt.pop %v609
  %v612 = vmul.f32 %v596, %v610
  %v613 = vmul.f32 %v597, %v611
  %v615 = vlaneseq
  %v616 = vshrl.u32 %v615, 7
  %v617 = vsub.s32 0, %v616
  %v618 = vrot.slane %v586, %v617
  %v620 = vmul.f32 %v612, %v618
  %v621 = vmul.f32 %v613, %v618
  %v623 = vlaneseq
  %v624 = vshrl.u32 %v623, 7
  %v625 = vsub.s32 0, %v624
  %v626 = vrot.slane %v587, %v625
  %v628 = vadd.f32 %v620, %v626
  %v629 = vadd.f32 %v621, %v626
  %v630 = vpack.c.bf16 %v629, %v628
  %v631 = vld [vmem:[%s19] sm:$0xf]
  %v632 = vld [vmem:[%s19 + $0x4] sm:$0xf]
  %v633 = vld [vmem:[%s19 + $0x8] sm:$0xf]
  %v634 = vld [vmem:[%s19 + $0xc] sm:$0xf]
  %v635 = vld [vmem:[%s20] sm:$0x1]
  %v637 = vlaneseq
  %v638 = vshrl.u32 %v637, 7
  %v639 = vsub.s32 0, %v638
  %v640 = vrot.slane %v635, %v639
  %v646 = vunpack.c.l.b16 %v631
  %v647 = vunpack.c.l.b16 %v632
  %v648 = vunpack.c.l.b16 %v633
  %v649 = vunpack.c.l.b16 %v634
  %v650 = vpack.c.b16 %v647, %v646
  %v651 = vpack.c.b16 %v649, %v648
  %v655 = vsel %vm73, %v630, 0
  %657 = vmatprep.subr.bf16.mxu0 0
  %658 = vmatpush1.bf16.msra.mxu0 0
  %659 = vmatprep.subr.bf16.mxu0 0
  %660 = vmatpush1.bf16.msra.mxu0 0
  %661 = vmatprep.subr.bf16.mxu0 0
  %662 = vmatpush1.bf16.msra.mxu0 0
  %663 = vmatprep.subr.bf16.mxu0 0
  %664 = vmatpush1.bf16.msra.mxu0 0
  %665 = vmatprep.subr.bf16.mxu0 0
  %666 = vmatpush1.bf16.msra.mxu0 0
  %667 = vmatprep.subr.bf16.mxu0 0
  %668 = vmatpush1.bf16.msra.mxu0 0
  %669 = vmatprep.subr.bf16.mxu0 0
  %670 = vmatpush1.bf16.msra.mxu0 %v651
  %671 = vmatprep.subr.bf16.mxu0 0
  %672 = vmatpush1.bf16.msra.mxu0 %v650
  %673 = vmatprep.subr.bf16.mxu0 0
  %674 = vmatpush2.bf16.msra.mxu0 0
  %675 = vmatprep.subr.bf16.mxu0 0
  %676 = vmatpush2.bf16.msra.mxu0 0
  %677 = vmatprep.subr.bf16.mxu0 0
  %678 = vmatpush2.bf16.msra.mxu0 0
  %679 = vmatprep.subr.bf16.mxu0 0
  %680 = vmatpush2.bf16.msra.mxu0 0
  %681 = vmatprep.subr.bf16.mxu0 0
  %682 = vmatpush2.bf16.msra.mxu0 0
  %683 = vmatprep.subr.bf16.mxu0 0
  %684 = vmatpush2.bf16.msra.mxu0 0
  %685 = vmatprep.subr.bf16.mxu0 0
  %686 = vmatpush2.bf16.msra.mxu0 0
  %687 = vmatprep.subr.bf16.mxu0 0
  %688 = vmatpush2.bf16.msra.mxu0 0
  %689 = vmatprep.mubr.bf16.mxu0 0
  %690 = vmatmul.mubr.bf16.gmra.mxu0 %v655
  %v691 = vpop.f32.mrf.mxu0
  %v692 = vadd.f32 %v640, %v691
  %v693 = vpop.f32.mrf.mxu0
  %v694 = vpop.f32.mrf.mxu0
  %v695 = vadd.f32 %v640, %v694
  %v696 = vpop.f32.mrf.mxu0
  %697 = vdwg.mxu0
  %v698 = vpack.c.bf16 %v695, %v692
  %v700 = vunpack.c.l.b16 %v698
  %v701 = vunpack.c.h.b16 %v698
  %v702 = vpack.c.b16 %v700, %v700
  %v703 = vpack.c.b16 %v701, %v701
  %706 = vst [vmem:[%s21] sm:$0xf] %v702
  %707 = vst [vmem:[%s21 + $0x4] sm:$0xf] %v703
  // Predicated region
  $region86: #{transformer_ff_stack.1} parent=0 // pred_check
    _
  $region87: #{transformer_ff_stack.1} parent=0 // pred_check_branch
    %709 = sbr.rel (0) target = $region89
  $region88: #{transformer_ff_stack.1} parent=0 // pred_region
    _
  $region89: #{transformer_ff_stack.1} parent=0 // pred_fallthru
    _
  // Predicated region
  $region90: #{transformer_ff_stack.1} parent=0 // pred_check
    _
  $region91: #{transformer_ff_stack.1} parent=0 // pred_check_branch
    %711 = sbr.rel (0) target = $region93
  $region92: #{transformer_ff_stack.1} parent=0 // pred_region
    _
  $region93: #{transformer_ff_stack.1} parent=0 // pred_fallthru
    _

</llo_original>
